<compile_context>
chip_gen: v7x
topology: tpu7x:2x2x1
jax: 0.10.0
libtpu: 0.0.40
codegen_flags: <defaults>
</compile_context>

<pallas_src>
import jax
import jax.numpy as jnp
from jax import lax
from jax.experimental import pallas as pl
from jax.experimental.pallas import tpu as pltpu


def _fc_head_kernel(x_ref, wt_ref, o_ref):
    # x_ref:  (tm, F) features in native dtype (cast to bf16 in-kernel, feeds MXU)
    # wt_ref: (C, F)  bf16 weight, PyTorch (out, in) lane-dense layout
    # o_ref:  (tm, C) f32
    x = x_ref[...].astype(jnp.bfloat16)
    # NT contraction: (tm, F) . (C, F)^T -> (tm, C), f32 accumulation on the MXU.
    o_ref[...] = lax.dot_general(
        x,
        wt_ref[...],
        dimension_numbers=(((1,), (1,)), ((), ())),
        preferred_element_type=jnp.float32,
    )


@jax.jit
def google2d_fc_forward(features, w_t_bf16):
    """GOOGLE_2D classification head: out = features @ W^T  (nn.Linear(1000, C, bias=False)).

    features: (B, 1000) GoogLeNet backbone output, any float dtype (cast in-kernel).
    w_t_bf16: (num_class, 1000) weight in PyTorch's (out, in) layout, already bf16
              (persisted once at init — no per-call cast).
    """
    B, F = features.shape
    C, Fw = w_t_bf16.shape
    assert F == Fw, (F, Fw)
    assert w_t_bf16.dtype == jnp.bfloat16, w_t_bf16.dtype

    cost = pl.CostEstimate(
        flops=2 * B * F * C,
        transcendentals=0,
        bytes_accessed=B * F * features.dtype.itemsize + F * C * 2 + B * C * 4,
    )

    if B <= 512:
        # Small batch: single whole-array VMEM block, no grid, no double-buffering.
        return pl.pallas_call(
            _fc_head_kernel,
            out_shape=jax.ShapeDtypeStruct((B, C), jnp.float32),
            cost_estimate=cost,
        )(features, w_t_bf16)

    # Large batch: tile B, keep the weight resident (constant index_map), and let
    # Mosaic shard the batch axis across TensorCores (v7x megacore).
    tm = 256
    grid = (pl.cdiv(B, tm),)
    return pl.pallas_call(
        _fc_head_kernel,
        out_shape=jax.ShapeDtypeStruct((B, C), jnp.float32),
        grid=grid,
        in_specs=[
            pl.BlockSpec((tm, F), lambda i: (i, 0)),
            pl.BlockSpec((C, F), lambda i: (0, 0)),  # weight-resident, no re-DMA
        ],
        out_specs=pl.BlockSpec((tm, C), lambda i: (i, 0)),
        cost_estimate=cost,
        compiler_params=pltpu.CompilerParams(dimension_semantics=("parallel",)),
    )(features, w_t_bf16)


def init_fc_weight(key, feat_dim, num_class):
    """One-time parameter init: PyTorch (out, in) layout, persisted in bf16."""
    w = jax.random.normal(key, (num_class, feat_dim), jnp.float32) * 0.02
    return w.astype(jnp.bfloat16)  # offline cast — never repeated per forward call


if __name__ == "__main__":
    key = jax.random.PRNGKey(0)
    k_feat, k_w = jax.random.split(key)

    B = 2                 # batch
    feat_dim = 1000       # GoogLeNet fc.out_features -> self.fc_input
    num_class = 10

    # TODO(synk): stand-in for the opaque pretrained GoogLeNet backbone output.
    features = jax.random.normal(k_feat, (B, feat_dim), jnp.float32)
    w_t_bf16 = init_fc_weight(k_w, feat_dim, num_class)

    out = google2d_fc_forward(features, w_t_bf16)
    out = jax.block_until_ready(out)

    # Reference 1 (exact kernel semantics): bf16-rounded operands, f32 accumulation.
    ref_exact = jnp.dot(
        features.astype(jnp.bfloat16).astype(jnp.float32),
        w_t_bf16.astype(jnp.float32).T,
    )
    # Reference 2 (full f32 head): loose check that bf16 quantization is benign here.
    ref_f32 = jnp.dot(features, w_t_bf16.astype(jnp.float32).T)

    assert out.shape == (B, num_class)
    assert jnp.allclose(out, ref_exact, atol=1e-3, rtol=1e-3), (out, ref_exact)
    assert jnp.allclose(out, ref_f32, atol=5e-2, rtol=5e-2), (out, ref_f32)

    print("KERNEL_OK")
</pallas_src>

<mosaic_0001>
module attributes {stable_mosaic.version = 11 : i64} {
  func.func @_fc_head_kernel(%arg0: memref<2x1000xf32, #tpu.memory_space<vmem>>, %arg1: memref<10x1000xbf16, #tpu.memory_space<vmem>>, %arg2: memref<2x10xf32, #tpu.memory_space<vmem>>) attributes {dimension_semantics = [], scalar_prefetch = 0 : i64, scratch_operands = 0 : i64, tpu.core_type = #tpu.core_type<tc>} {
    %c0 = arith.constant 0 : index
    %c0_0 = arith.constant 0 : index
    %0 = vector.load %arg0[%c0, %c0_0] : memref<2x1000xf32, #tpu.memory_space<vmem>>, vector<2x1000xf32>
    %1 = arith.truncf %0 : vector<2x1000xf32> to vector<2x1000xbf16>
    %c0_1 = arith.constant 0 : index
    %c0_2 = arith.constant 0 : index
    %2 = vector.load %arg1[%c0_1, %c0_2] : memref<10x1000xbf16, #tpu.memory_space<vmem>>, vector<10x1000xbf16>
    %cst = arith.constant dense<0.000000e+00> : vector<2x10xf32>
    %3 = tpu.matmul %1, %2, %cst {dimension_numbers = #tpu.dot_dimension_numbers<[1], [1], [0], [0], [0, 0, 1, 0], [], []>} : vector<2x1000xbf16>, vector<10x1000xbf16>, vector<2x10xf32> -> vector<2x10xf32>
    %c0_3 = arith.constant 0 : index
    %c0_4 = arith.constant 0 : index
    %4 = vector.load %arg2[%c0_3, %c0_4] : memref<2x10xf32, #tpu.memory_space<vmem>>, vector<2x10xf32>
    tpu.vector_store %arg2[%c0_3, %c0_4], %3 {strides = array<i32>} : memref<2x10xf32, #tpu.memory_space<vmem>>, vector<2x10xf32>,
    return
  }
}

</mosaic_0001>

<llo_original>
// kernel: google2d_fc_forward.1
$region0: #{google2d_fc_forward.1}
  #allocation0 [shape = 'u32[]', space=smem, size = 0x4, offset = 0x4, fixed_abs, tag = 'smem constant byte address 0x4 - core index']
  #allocation1 [shape = 'u32[144,128]{1,0:T(1,128)}', space=vmem, size = 0x12000, scoped, tag = 'internal scratch']
  %s0 = inlined_call_operand.hbm [shape: f32[2,1000], index: 0, kind: input, shape index: {}]
  %s1 = inlined_call_operand.hbm [shape: bf16[10,1000], index: 1, kind: input, shape index: {}]
  %s2 = inlined_call_operand.hbm [shape: f32[2,10], index: 2, kind: output, shape index: {}]
  %s3 = sld [smem:[#allocation0]]
  $region26: #{google2d_fc_forward.1} parent=0
    _
  %s5 = ssub.s32 1, %s3
  %s6 = scalar_select 0, %s5, %s3
  $region1: #{google2d_fc_forward.1} parent=0
    #allocation2 [shape = 'u8[8192]{0}', space=vmem, size = 0x2000, scoped, tag = 'input window, operand 0, single buffered']
    #allocation3 [shape = 's32[1]{0}', space=sflag, size = 0x4, scoped, tag = 'scoped memory for google2d_fc_forward.1']
    #allocation4 [shape = 's32[1]{0}', space=sflag, size = 0x4, scoped, tag = 'scoped memory for google2d_fc_forward.1']
    #allocation5 [shape = 'u8[32768]{0}', space=vmem, size = 0x8000, scoped, tag = 'input window, operand 1, single buffered']
    #allocation6 [shape = 's32[1]{0}', space=sflag, size = 0x4, scoped, tag = 'scoped memory for google2d_fc_forward.1']
    #allocation7 [shape = 'u8[1024]{0}', space=vmem, size = 0x400, scoped, tag = 'output window, operand 0, single buffered']
    %7 = vsyncpa [#allocation3], 0
    %8 = vsyncpa [#allocation6], 0
    %9 = vsyncpa [#allocation4], 0
    // Predicated region
    $region2: #{google2d_fc_forward.1} parent=1 // pred_check
      _
    $region3: #{google2d_fc_forward.1} parent=1 // pred_check_branch
      %11 = sbr.rel (0) target = $region5
    $region4: #{google2d_fc_forward.1} parent=1 // pred_region
      %s13 = ssub.s32 256, 256
      %14 = vsyncadd [#allocation3], %s13
      %s16 = sshll.u32 [#allocation2], 4
      %s17 = int_to_ptr.vmem [resolvable:$true] %s16
      %19 = dma.hbm_to_vmem [thread:$0]  %s0, 256, %s17, [#allocation3]
    $region5: #{google2d_fc_forward.1} parent=1 // pred_fallthru
      _
    // Predicated region
    $region6: #{google2d_fc_forward.1} parent=1 // pred_check
      _
    $region7: #{google2d_fc_forward.1} parent=1 // pred_check_branch
      %21 = sbr.rel (0) target = $region9
    $region8: #{google2d_fc_forward.1} parent=1 // pred_region
      %s23 = ssub.s32 1024, 1024
      %24 = vsyncadd [#allocation6], %s23
      %s25 = sshll.u32 [#allocation5], 4
      %s26 = int_to_ptr.vmem [resolvable:$true] %s25
      %31 = dma.hbm_to_vmem [thread:$0]  %s1, 1024, %s26, [#allocation6], 512, 512, 32
    $region9: #{google2d_fc_forward.1} parent=1 // pred_fallthru
      _
    // Predicated region
    $region10: #{google2d_fc_forward.1} parent=1 // pred_check
      _
    $region11: #{google2d_fc_forward.1} parent=1 // pred_check_branch
      %33 = sbr.rel (0) target = $region13
    $region12: #{google2d_fc_forward.1} parent=1 // pred_region
      %34 = dma.done [#allocation3], 256
    $region13: #{google2d_fc_forward.1} parent=1 // pred_fallthru
      _
    // Predicated region
    $region14: #{google2d_fc_forward.1} parent=1 // pred_check
      _
    $region15: #{google2d_fc_forward.1} parent=1 // pred_check_branch
      %36 = sbr.rel (0) target = $region17
    $region16: #{google2d_fc_forward.1} parent=1 // pred_region
      %37 = dma.done [#allocation6], 1024
    $region17: #{google2d_fc_forward.1} parent=1 // pred_fallthru
      _
    %v39 = vld [vmem:[#allocation2] sm:$0xff]
    %v40 = vld [vmem:[#allocation2 + $0x8] sm:$0xff]
    %v43 = vcombine.high %v39, %v39
    %v45 = vunpack.c.l.s4 1983009808
    %v46 = vunpack.c.0.s8 %v45
    %v47 = vlaneseq
    %v48 = vshrl.u32 %v47, 7
    %v49 = vsub.s32 %v46, %v48
    %v50 = vrot.slane %v39, %v49
    %v52 = vunpack.c.l.s4 1983009808
    %v53 = vunpack.c.0.s8 %v52
    %v54 = vlaneseq
    %v55 = vshrl.u32 %v54, 7
    %v56 = vsub.s32 %v53, %v55
    %v57 = vrot.slane %v43, %v56
    %v58 = vcombine.high %v50, %v50
    %v59 = vcombine.high %v57, %v57
    %v60 = vcombine.high %v40, %v40
    %v62 = vunpack.c.l.s4 1983009808
    %v63 = vunpack.c.0.s8 %v62
    %v64 = vlaneseq
    %v65 = vshrl.u32 %v64, 7
    %v66 = vsub.s32 %v63, %v65
    %v67 = vrot.slane %v40, %v66
    %v69 = vunpack.c.l.s4 1983009808
    %v70 = vunpack.c.0.s8 %v69
    %v71 = vlaneseq
    %v72 = vshrl.u32 %v71, 7
    %v73 = vsub.s32 %v70, %v72
    %v74 = vrot.slane %v60, %v73
    %v75 = vcombine.high %v67, %v67
    %v76 = vcombine.high %v74, %v74
    %v85 = vpack.c.bf16 %v50, %v50
    %v86 = vpack.c.bf16 %v58, %v58
    %v87 = vpack.c.bf16 %v57, %v57
    %v88 = vpack.c.bf16 %v59, %v59
    %v89 = vpack.c.bf16 %v67, %v67
    %v90 = vpack.c.bf16 %v75, %v75
    %v91 = vpack.c.bf16 %v74, %v74
    %v92 = vpack.c.bf16 %v76, %v76
    %v93 = vld [vmem:[#allocation5] sm:$0xff]
    %v94 = vld [vmem:[#allocation5 + $0x8] sm:$0xff]
    %v95 = vld [vmem:[#allocation5 + $0x10] sm:$0xff]
    %v96 = vld [vmem:[#allocation5 + $0x18] sm:$0xff]
    %v97 = vld [vmem:[#allocation5 + $0x20] sm:$0x11]
    %v98 = vld [vmem:[#allocation5 + $0x28] sm:$0x11]
    %v99 = vld [vmem:[#allocation5 + $0x30] sm:$0x11]
    %v100 = vld [vmem:[#allocation5 + $0x38] sm:$0x11]
    %v109 = vunpack.c.l.b16 %v93
    %v110 = vunpack.c.h.b16 %v93
    %v111 = vunpack.c.l.b16 %v94
    %v112 = vunpack.c.h.b16 %v94
    %v113 = vunpack.c.l.b16 %v95
    %v114 = vunpack.c.h.b16 %v95
    %v115 = vunpack.c.l.b16 %v96
    %v116 = vunpack.c.h.b16 %v96
    %v117 = vunpack.c.l.b16 %v97
    %v118 = vunpack.c.h.b16 %v97
    %v119 = vunpack.c.l.b16 %v98
    %v120 = vunpack.c.h.b16 %v98
    %v121 = vunpack.c.l.b16 %v99
    %v122 = vunpack.c.h.b16 %v99
    %v123 = vunpack.c.l.b16 %v100
    %v124 = vunpack.c.h.b16 %v100
    %v125 = vpack.c.b16 %v117, %v109
    %v126 = vpack.c.b16 %v118, %v110
    %v127 = vpack.c.b16 %v119, %v111
    %v128 = vpack.c.b16 %v120, %v112
    %v129 = vpack.c.b16 %v121, %v113
    %v130 = vpack.c.b16 %v122, %v114
    %v131 = vpack.c.b16 %v123, %v115
    %v132 = vpack.c.b16 %v124, %v116
    %vm140 = vcmask 850944
    %v142 = vsel %vm140, %v92, 0
    %v145 = vsel %vm140, %v132, 0
    %147 = vmatprep.subr.bf16.mxu0 %v126
    %148 = vmatpush1.bf16.xpose.msra.mxu0 %v125
    %149 = vmatprep.subr.bf16.mxu0 0
    %150 = vmatpush1.bf16.xpose.msra.mxu0 0
    %151 = vmatprep.subr.bf16.mxu0 0
    %152 = vmatpush1.bf16.xpose.msra.mxu0 0
    %153 = vmatprep.subr.bf16.mxu0 0
    %154 = vmatpush1.bf16.xpose.msra.mxu0 0
    %155 = vmatprep.subr.bf16.mxu0 0
    %156 = vmatpush1.bf16.xpose.msra.mxu0 0
    %157 = vmatprep.subr.bf16.mxu0 0
    %158 = vmatpush1.bf16.xpose.msra.mxu0 0
    %159 = vmatprep.subr.bf16.mxu0 0
    %160 = vmatpush1.bf16.xpose.msra.mxu0 0
    %161 = vmatprep.subr.bf16.mxu0 0
    %162 = vmatpush1.bf16.xpose.msra.mxu0 0
    %163 = vmatprep.subr.bf16.mxu0 0
    %164 = vmatpush1.bf16.xpose.msra.mxu0 0
    %165 = vmatprep.subr.bf16.mxu0 0
    %166 = vmatpush1.bf16.xpose.msra.mxu0 0
    %167 = vmatprep.subr.bf16.mxu0 0
    %168 = vmatpush1.bf16.xpose.msra.mxu0 0
    %169 = vmatprep.subr.bf16.mxu0 0
    %170 = vmatpush1.bf16.xpose.msra.mxu0 0
    %171 = vmatprep.subr.bf16.mxu0 0
    %172 = vmatpush1.bf16.xpose.msra.mxu0 0
    %173 = vmatprep.subr.bf16.mxu0 0
    %174 = vmatpush1.bf16.xpose.msra.mxu0 0
    %175 = vmatprep.subr.bf16.mxu0 0
    %176 = vmatpush1.bf16.xpose.msra.mxu0 0
    %177 = vmatprep.subr.bf16.mxu0 0
    %178 = vmatpush1.bf16.xpose.msra.mxu0 0
    %179 = vmatprep.mubr.bf16.mxu0 %v86
    %180 = vmatmul.mubr.bf16.gmra.mrb[0].mxu0 %v85
    %v181 = vpop.f32.mrb[0].mxu0
    %v182 = vadd.f32 0.0, %v181
    %v183 = vpop.f32.mrb[0].mxu0
    %v184 = vpop.f32.mrb[0].mxu0
    %v185 = vpop.f32.mrb[0].mxu0
    %186 = vdwg.mxu0
    %187 = vmatprep.subr.bf16.mxu0 %v128
    %188 = vmatpush1.bf16.xpose.msra.mxu0 %v127
    %189 = vmatprep.subr.bf16.mxu0 0
    %190 = vmatpush1.bf16.xpose.msra.mxu0 0
    %191 = vmatprep.subr.bf16.mxu0 0
    %192 = vmatpush1.bf16.xpose.msra.mxu0 0
    %193 = vmatprep.subr.bf16.mxu0 0
    %194 = vmatpush1.bf16.xpose.msra.mxu0 0
    %195 = vmatprep.subr.bf16.mxu0 0
    %196 = vmatpush1.bf16.xpose.msra.mxu0 0
    %197 = vmatprep.subr.bf16.mxu0 0
    %198 = vmatpush1.bf16.xpose.msra.mxu0 0
    %199 = vmatprep.subr.bf16.mxu0 0
    %200 = vmatpush1.bf16.xpose.msra.mxu0 0
    %201 = vmatprep.subr.bf16.mxu0 0
    %202 = vmatpush1.bf16.xpose.msra.mxu0 0
    %203 = vmatprep.subr.bf16.mxu0 0
    %204 = vmatpush1.bf16.xpose.msra.mxu0 0
    %205 = vmatprep.subr.bf16.mxu0 0
    %206 = vmatpush1.bf16.xpose.msra.mxu0 0
    %207 = vmatprep.subr.bf16.mxu0 0
    %208 = vmatpush1.bf16.xpose.msra.mxu0 0
    %209 = vmatprep.subr.bf16.mxu0 0
    %210 = vmatpush1.bf16.xpose.msra.mxu0 0
    %211 = vmatprep.subr.bf16.mxu0 0
    %212 = vmatpush1.bf16.xpose.msra.mxu0 0
    %213 = vmatprep.subr.bf16.mxu0 0
    %214 = vmatpush1.bf16.xpose.msra.mxu0 0
    %215 = vmatprep.subr.bf16.mxu0 0
    %216 = vmatpush1.bf16.xpose.msra.mxu0 0
    %217 = vmatprep.subr.bf16.mxu0 0
    %218 = vmatpush1.bf16.xpose.msra.mxu0 0
    %219 = vmatprep.mubr.bf16.mxu0 %v88
    %220 = vmatmul.mubr.bf16.gmra.mrb[0].mxu0 %v87
    %v221 = vpop.f32.mrb[0].mxu0
    %v222 = vadd.f32 %v182, %v221
    %v223 = vpop.f32.mrb[0].mxu0
    %v224 = vpop.f32.mrb[0].mxu0
    %v225 = vpop.f32.mrb[0].mxu0
    %226 = vdwg.mxu0
    %227 = vmatprep.subr.bf16.mxu0 %v130
    %228 = vmatpush1.bf16.xpose.msra.mxu0 %v129
    %229 = vmatprep.subr.bf16.mxu0 0
    %230 = vmatpush1.bf16.xpose.msra.mxu0 0
    %231 = vmatprep.subr.bf16.mxu0 0
    %232 = vmatpush1.bf16.xpose.msra.mxu0 0
    %233 = vmatprep.subr.bf16.mxu0 0
    %234 = vmatpush1.bf16.xpose.msra.mxu0 0
    %235 = vmatprep.subr.bf16.mxu0 0
    %236 = vmatpush1.bf16.xpose.msra.mxu0 0
    %237 = vmatprep.subr.bf16.mxu0 0
    %238 = vmatpush1.bf16.xpose.msra.mxu0 0
    %239 = vmatprep.subr.bf16.mxu0 0
    %240 = vmatpush1.bf16.xpose.msra.mxu0 0
    %241 = vmatprep.subr.bf16.mxu0 0
    %242 = vmatpush1.bf16.xpose.msra.mxu0 0
    %243 = vmatprep.subr.bf16.mxu0 0
    %244 = vmatpush1.bf16.xpose.msra.mxu0 0
    %245 = vmatprep.subr.bf16.mxu0 0
    %246 = vmatpush1.bf16.xpose.msra.mxu0 0
    %247 = vmatprep.subr.bf16.mxu0 0
    %248 = vmatpush1.bf16.xpose.msra.mxu0 0
    %249 = vmatprep.subr.bf16.mxu0 0
    %250 = vmatpush1.bf16.xpose.msra.mxu0 0
    %251 = vmatprep.subr.bf16.mxu0 0
    %252 = vmatpush1.bf16.xpose.msra.mxu0 0
    %253 = vmatprep.subr.bf16.mxu0 0
    %254 = vmatpush1.bf16.xpose.msra.mxu0 0
    %255 = vmatprep.subr.bf16.mxu0 0
    %256 = vmatpush1.bf16.xpose.msra.mxu0 0
    %257 = vmatprep.subr.bf16.mxu0 0
    %258 = vmatpush1.bf16.xpose.msra.mxu0 0
    %259 = vmatprep.mubr.bf16.mxu0 %v90
    %260 = vmatmul.mubr.bf16.gmra.mrb[0].mxu0 %v89
    %v261 = vpop.f32.mrb[0].mxu0
    %v262 = vadd.f32 %v222, %v261
    %v263 = vpop.f32.mrb[0].mxu0
    %v264 = vpop.f32.mrb[0].mxu0
    %v265 = vpop.f32.mrb[0].mxu0
    %266 = vdwg.mxu0
    %267 = vmatprep.subr.bf16.mxu0 %v145
    %268 = vmatpush1.bf16.xpose.msra.mxu0 %v131
    %269 = vmatprep.subr.bf16.mxu0 0
    %270 = vmatpush1.bf16.xpose.msra.mxu0 0
    %271 = vmatprep.subr.bf16.mxu0 0
    %272 = vmatpush1.bf16.xpose.msra.mxu0 0
    %273 = vmatprep.subr.bf16.mxu0 0
    %274 = vmatpush1.bf16.xpose.msra.mxu0 0
    %275 = vmatprep.subr.bf16.mxu0 0
    %276 = vmatpush1.bf16.xpose.msra.mxu0 0
    %277 = vmatprep.subr.bf16.mxu0 0
    %278 = vmatpush1.bf16.xpose.msra.mxu0 0
    %279 = vmatprep.subr.bf16.mxu0 0
    %280 = vmatpush1.bf16.xpose.msra.mxu0 0
    %281 = vmatprep.subr.bf16.mxu0 0
    %282 = vmatpush1.bf16.xpose.msra.mxu0 0
    %283 = vmatprep.subr.bf16.mxu0 0
    %284 = vmatpush1.bf16.xpose.msra.mxu0 0
    %285 = vmatprep.subr.bf16.mxu0 0
    %286 = vmatpush1.bf16.xpose.msra.mxu0 0
    %287 = vmatprep.subr.bf16.mxu0 0
    %288 = vmatpush1.bf16.xpose.msra.mxu0 0
    %289 = vmatprep.subr.bf16.mxu0 0
    %290 = vmatpush1.bf16.xpose.msra.mxu0 0
    %291 = vmatprep.subr.bf16.mxu0 0
    %292 = vmatpush1.bf16.xpose.msra.mxu0 0
    %293 = vmatprep.subr.bf16.mxu0 0
    %294 = vmatpush1.bf16.xpose.msra.mxu0 0
    %295 = vmatprep.subr.bf16.mxu0 0
    %296 = vmatpush1.bf16.xpose.msra.mxu0 0
    %297 = vmatprep.subr.bf16.mxu0 0
    %298 = vmatpush1.bf16.xpose.msra.mxu0 0
    %299 = vmatprep.mubr.bf16.mxu0 %v142
    %300 = vmatmul.mubr.bf16.gmra.mrb[0].mxu0 %v91
    %v301 = vpop.f32.mrb[0].mxu0
    %v302 = vadd.f32 %v262, %v301
    %v303 = vpop.f32.mrb[0].mxu0
    %v304 = vpop.f32.mrb[0].mxu0
    %v305 = vpop.f32.mrb[0].mxu0
    %306 = vdwg.mxu0
    %vm307 = vcmask 74752
    %308 = vst.msk [vmem:[#allocation7] sm:$0x3] %vm307, %v302
    // Predicated region
    $region18: #{google2d_fc_forward.1} parent=1 // pred_check
      _
    $region19: #{google2d_fc_forward.1} parent=1 // pred_check_branch
      %310 = sbr.rel (0) target = $region21
    $region20: #{google2d_fc_forward.1} parent=1 // pred_region
      %s312 = ssub.s32 32, 32
      %313 = vsyncadd [#allocation4], %s312
      %s315 = sshll.u32 [#allocation7], 4
      %s316 = int_to_ptr.vmem [resolvable:$true] %s315
      %318 = dma.vmem_to_hbm [thread:$0]  %s316, 32, %s2, [#allocation4]
    $region21: #{google2d_fc_forward.1} parent=1 // pred_fallthru
      _
    // Predicated region
    $region22: #{google2d_fc_forward.1} parent=1 // pred_check
      _
    $region23: #{google2d_fc_forward.1} parent=1 // pred_check_branch
      %320 = sbr.rel (0) target = $region25
    $region24: #{google2d_fc_forward.1} parent=1 // pred_region
      %321 = dma.done [#allocation4], 32
    $region25: #{google2d_fc_forward.1} parent=1 // pred_fallthru
      _
    %322 = vsyncpa [#allocation3], 1
    %323 = vsyncpa [#allocation6], 1
    %324 = vsyncpa [#allocation4], 1

</llo_original>
